<compile_context>
chip_gen: v7x
topology: tpu7x:2x2x1
jax: 0.10.0
libtpu: 0.0.40
codegen_flags: <defaults>
</compile_context>

<pallas_src>
import jax
import jax.numpy as jnp
from jax import lax
from jax.experimental import pallas as pl
from jax.experimental.pallas import tpu as pltpu


NEG_INF = -1e30  # plain Python float: becomes a kernel-local literal, not a captured array


def head_kernel(x_ref, wkqv_ref, o_ref):
    # x_ref:    (B*T, C)  bf16   flattened batch*time rows
    # wkqv_ref: (C, 3H)   bf16   fused [Wk | Wq * H^-0.5 | Wv]
    # o_ref:    (B, T, H) f32
    B, T, H = o_ref.shape

    # --- fused K/Q/V projection: bf16 operands on the MXU, f32 accumulation ---
    kqv = jnp.dot(x_ref[...], wkqv_ref[...],
                  preferred_element_type=jnp.float32)          # (B*T, 3H) f32
    kqv = kqv.reshape(B, T, 3 * H)

    # Static lane slices of a VMEM value: no extra matmuls, no DMA.
    # TODO(synk): for real head sizes pad each K/Q/V column block to a multiple
    # of 128 lanes so these slices are tile-aligned free views.
    k = kqv[:, :, 0 * H:1 * H]                                 # (B, T, H)
    q = kqv[:, :, 1 * H:2 * H]                                 # (B, T, H), pre-scaled
    v = kqv[:, :, 2 * H:3 * H]                                 # (B, T, H)

    # scores = Q @ K^T without materializing an explicit transpose: contract
    # the H dims directly so Mosaic folds the transposed operand into the MXU.
    scores = jnp.einsum('btd,bsd->bts',
                        q.astype(jnp.bfloat16), k.astype(jnp.bfloat16),
                        preferred_element_type=jnp.float32)    # (B, T, T) f32

    # Causal mask: allow col <= row. Large finite negative -> exact 0 after exp,
    # robust (no NaN) even for fully-masked rows.
    row = lax.broadcasted_iota(jnp.int32, (T, T), 0)
    col = lax.broadcasted_iota(jnp.int32, (T, T), 1)
    scores = jnp.where((col <= row)[None, :, :], scores, NEG_INF)

    # Numerically stable softmax in f32; divide moved to the EUP via approx rcp.
    m = jnp.max(scores, axis=-1, keepdims=True)
    e = jnp.exp(scores - m)
    s = jnp.sum(e, axis=-1, keepdims=True)
    attn = e * pl.reciprocal(s, approx=True)

    # attn @ V on the MXU (bf16 operands, f32 accumulation).
    y = jnp.einsum('bts,bsd->btd',
                   attn.astype(jnp.bfloat16), v.astype(jnp.bfloat16),
                   preferred_element_type=jnp.float32)         # (B, T, H)
    o_ref[...] = y.astype(o_ref.dtype)


@jax.jit
def head_forward(x, wk, wq, wv):
    """x: (B, T, C); wk/wq/wv: (C, H) -> (B, T, H)"""
    B, T, C = x.shape
    H = wk.shape[-1]
    scale = float(H) ** -0.5

    # Fuse the three projection weights into one (C, 3H) matrix (single MXU
    # weight push) and fold the 1/sqrt(H) attention scale into Wq for free.
    # Cast operands to bf16 here: halves HBM->VMEM DMA bytes and removes
    # per-invocation VPU casts inside the kernel.
    wkqv = jnp.concatenate([wk, wq * scale, wv], axis=1).astype(jnp.bfloat16)
    x_flat = x.reshape(B * T, C).astype(jnp.bfloat16)

    # Single kernel invocation (no grid): at these shapes the work is tiny and
    # grid steps would only add per-step pipeline overhead on the 1-TC v5e/v6e.
    return pl.pallas_call(
        head_kernel,
        out_shape=jax.ShapeDtypeStruct((B, T, H), jnp.float32),
        in_specs=[
            pl.BlockSpec(memory_space=pltpu.MemorySpace.VMEM),
            pl.BlockSpec(memory_space=pltpu.MemorySpace.VMEM),
        ],
        out_specs=pl.BlockSpec(memory_space=pltpu.MemorySpace.VMEM),
    )(x_flat, wkqv)


def reference_head(x, wk, wq, wv):
    """Pure-JAX f32 reference matching the PyTorch forward."""
    k = x @ wk
    q = x @ wq
    v = x @ wv
    d = k.shape[-1]
    a = (q @ jnp.swapaxes(k, -1, -2)) * (d ** -0.5)
    T = x.shape[1]
    mask = jnp.tril(jnp.ones((T, T)))
    a = jnp.where(mask == 0, -jnp.inf, a)
    a = jax.nn.softmax(a, axis=-1)
    return a @ v


if __name__ == "__main__":
    # Small shapes: batch=2, seq (n) = T = 8, n_embedding = 32, head_size = 16
    B, T, C, H = 2, 8, 32, 16

    key = jax.random.PRNGKey(0)
    kx, kk, kq, kv = jax.random.split(key, 4)
    x = jax.random.normal(kx, (B, T, C), dtype=jnp.float32)
    # deterministic weight init (same spirit as nn.Linear uniform init)
    bound = 1.0 / (C ** 0.5)
    wk = jax.random.uniform(kk, (C, H), jnp.float32, -bound, bound)
    wq = jax.random.uniform(kq, (C, H), jnp.float32, -bound, bound)
    wv = jax.random.uniform(kv, (C, H), jnp.float32, -bound, bound)

    y = head_forward(x, wk, wq, wv)
    y = jax.block_until_ready(y)

    y_ref = reference_head(x, wk, wq, wv)
    assert y.shape == (B, T, H)
    # Tolerance reflects bf16 MXU operands (f32 accumulation) + approx reciprocal.
    assert jnp.allclose(y, y_ref, atol=3e-2, rtol=3e-2), "mismatch vs reference"

    print("KERNEL_OK")
</pallas_src>

<mosaic_0001>
module attributes {stable_mosaic.version = 11 : i64} {
  func.func @head_kernel(%arg0: memref<16x32xbf16, #tpu.memory_space<vmem>>, %arg1: memref<32x48xbf16, #tpu.memory_space<vmem>>, %arg2: memref<2x8x16xf32, #tpu.memory_space<vmem>>) attributes {dimension_semantics = [], scalar_prefetch = 0 : i64, scratch_operands = 0 : i64, tpu.core_type = #tpu.core_type<tc>} {
    %c0 = arith.constant 0 : index
    %c0_0 = arith.constant 0 : index
    %0 = vector.load %arg0[%c0, %c0_0] : memref<16x32xbf16, #tpu.memory_space<vmem>>, vector<16x32xbf16>
    %c0_1 = arith.constant 0 : index
    %c0_2 = arith.constant 0 : index
    %1 = vector.load %arg1[%c0_1, %c0_2] : memref<32x48xbf16, #tpu.memory_space<vmem>>, vector<32x48xbf16>
    %cst = arith.constant dense<0.000000e+00> : vector<16x48xf32>
    %2 = tpu.matmul %0, %1, %cst {dimension_numbers = #tpu.dot_dimension_numbers<[1], [0], [0], [1], [0, 0, 1, 1], [], []>} : vector<16x32xbf16>, vector<32x48xbf16>, vector<16x48xf32> -> vector<16x48xf32>
    %3 = vector.shape_cast %2 : vector<16x48xf32> to vector<2x8x48xf32>
    %4 = vector.extract_strided_slice %3 {offsets = [0, 0, 0], sizes = [2, 8, 16], strides = [1, 1, 1]} : vector<2x8x48xf32> to vector<2x8x16xf32>
    %5 = vector.extract_strided_slice %3 {offsets = [0, 0, 16], sizes = [2, 8, 16], strides = [1, 1, 1]} : vector<2x8x48xf32> to vector<2x8x16xf32>
    %6 = vector.extract_strided_slice %3 {offsets = [0, 0, 32], sizes = [2, 8, 16], strides = [1, 1, 1]} : vector<2x8x48xf32> to vector<2x8x16xf32>
    %7 = arith.truncf %5 : vector<2x8x16xf32> to vector<2x8x16xbf16>
    %8 = arith.truncf %4 : vector<2x8x16xf32> to vector<2x8x16xbf16>
    "tpu.trace_start"() <{level = 10 : i32, message = "btd,bsd->bts"}> : () -> ()
    %cst_3 = arith.constant dense<0.000000e+00> : vector<2x8x8xf32>
    %9 = tpu.matmul %7, %8, %cst_3 {dimension_numbers = #tpu.dot_dimension_numbers<[2], [2], [1], [1], [0, 0, 0, 1, 1, 1], [0], [0]>} : vector<2x8x16xbf16>, vector<2x8x16xbf16>, vector<2x8x8xf32> -> vector<2x8x8xf32>
    "tpu.trace_stop"() : () -> ()
    %10 = tpu.iota {dimensions = array<i32: 0>} : vector<8x8xi32>
    %11 = tpu.iota {dimensions = array<i32: 1>} : vector<8x8xi32>
    %12 = arith.cmpi sle, %11, %10 : vector<8x8xi32>
    %13 = vector.shape_cast %12 : vector<8x8xi1> to vector<1x8x8xi1>
    %cst_4 = arith.constant -1.000000e+30 : f32
    %14 = vector.shape_cast %13 : vector<1x8x8xi1> to vector<1x8x8xi1>
    %15 = vector.broadcast %14 : vector<1x8x8xi1> to vector<2x8x8xi1>
    %16 = vector.broadcast %cst_4 : f32 to vector<2x8x8xf32>
    %17 = arith.select %15, %9, %16 : vector<2x8x8xi1>, vector<2x8x8xf32>
    %cst_5 = arith.constant dense<0xFF800000> : vector<2x8xf32>
    %18 = vector.multi_reduction <maximumf>, %17, %cst_5 [2] : vector<2x8x8xf32> to vector<2x8xf32>
    %19 = vector.shape_cast %18 : vector<2x8xf32> to vector<2x8x1xf32>
    %20 = vector.broadcast %19 : vector<2x8x1xf32> to vector<2x8x8xf32>
    %21 = arith.subf %17, %20 : vector<2x8x8xf32>
    %22 = math.exp %21 : vector<2x8x8xf32>
    %cst_6 = arith.constant dense<0.000000e+00> : vector<2x8xf32>
    %23 = vector.multi_reduction <add>, %22, %cst_6 [2] : vector<2x8x8xf32> to vector<2x8xf32>
    %24 = vector.shape_cast %23 : vector<2x8xf32> to vector<2x8x1xf32>
    %25 = tpu.reciprocal %24 {approx = true} : vector<2x8x1xf32> -> vector<2x8x1xf32>
    %26 = vector.broadcast %25 : vector<2x8x1xf32> to vector<2x8x8xf32>
    %27 = arith.mulf %22, %26 : vector<2x8x8xf32>
    %28 = arith.truncf %27 : vector<2x8x8xf32> to vector<2x8x8xbf16>
    %29 = arith.truncf %6 : vector<2x8x16xf32> to vector<2x8x16xbf16>
    "tpu.trace_start"() <{level = 10 : i32, message = "bts,bsd->btd"}> : () -> ()
    %cst_7 = arith.constant dense<0.000000e+00> : vector<2x8x16xf32>
    %30 = tpu.matmul %28, %29, %cst_7 {dimension_numbers = #tpu.dot_dimension_numbers<[2], [1], [1], [2], [0, 0, 0, 1, 1, 2], [0], [0]>} : vector<2x8x8xbf16>, vector<2x8x16xbf16>, vector<2x8x16xf32> -> vector<2x8x16xf32>
    "tpu.trace_stop"() : () -> ()
    %c0_8 = arith.constant 0 : index
    %c0_9 = arith.constant 0 : index
    %c0_10 = arith.constant 0 : index
    %31 = vector.load %arg2[%c0_8, %c0_9, %c0_10] : memref<2x8x16xf32, #tpu.memory_space<vmem>>, vector<2x8x16xf32>
    tpu.vector_store %arg2[%c0_8, %c0_9, %c0_10], %30 {strides = array<i32>} : memref<2x8x16xf32, #tpu.memory_space<vmem>>, vector<2x8x16xf32>,
    return
  }
}

</mosaic_0001>

<llo_original>
// kernel: head_forward.1
$region0: #{head_forward.1}
  #allocation0 [shape = 'u32[]', space=smem, size = 0x4, offset = 0x4, fixed_abs, tag = 'smem constant byte address 0x4 - core index']
  #allocation1 [shape = 'u32[144,128]{1,0:T(1,128)}', space=vmem, size = 0x12000, scoped, tag = 'internal scratch']
  %s0 = inlined_call_operand.vmem [shape: bf16[16,32], index: 0, kind: input, shape index: {}]
  %s1 = inlined_call_operand.vmem [shape: bf16[32,48], index: 1, kind: input, shape index: {}]
  %s2 = inlined_call_operand.hbm [shape: f32[2,8,16], index: 2, kind: output, shape index: {}]
  %s3 = sld [smem:[#allocation0]]
  $region18: #{head_forward.1} parent=0
    _
  %s5 = ssub.s32 1, %s3
  %s6 = scalar_select 0, %s5, %s3
  $region1: #{head_forward.1} parent=0
    #allocation2 [shape = 'u8[8192]{0}', space=vmem, size = 0x2000, scoped, tag = 'output window, operand 0, single buffered']
    #allocation3 [shape = 's32[1]{0}', space=sflag, size = 0x4, scoped, tag = 'scoped memory for head_forward.1']
    %7 = vsyncpa [#allocation3], 0
    // Predicated region
    $region2: #{head_forward.1} parent=1 // pred_check
      _
    $region3: #{head_forward.1} parent=1 // pred_check_branch
      %9 = sbr.rel (0) target = $region5
    $region4: #{head_forward.1} parent=1 // pred_region
      _
    $region5: #{head_forward.1} parent=1 // pred_fallthru
      _
    // Predicated region
    $region6: #{head_forward.1} parent=1 // pred_check
      _
    $region7: #{head_forward.1} parent=1 // pred_check_branch
      %11 = sbr.rel (0) target = $region9
    $region8: #{head_forward.1} parent=1 // pred_region
      _
    $region9: #{head_forward.1} parent=1 // pred_fallthru
      _
    %v13 = vld [vmem:[%s0] sm:$0xf]
    %v14 = vld [vmem:[%s0 + $0x4] sm:$0xf]
    %v15 = vld [vmem:[%s1] sm:$0xf]
    %v16 = vld [vmem:[%s1 + $0x4] sm:$0xf]
    %v17 = vld [vmem:[%s1 + $0x8] sm:$0xf]
    %v18 = vld [vmem:[%s1 + $0xc] sm:$0xf]
    %v21 = vunpack.c.l.b16 %v13
    %v22 = vunpack.c.l.b16 %v14
    %v23 = vpack.c.b16 %v22, %v21
    %v28 = vunpack.c.l.b16 %v15
    %v29 = vunpack.c.l.b16 %v16
    %v30 = vunpack.c.l.b16 %v17
    %v31 = vunpack.c.l.b16 %v18
    %v32 = vpack.c.b16 %v29, %v28
    %v33 = vpack.c.b16 %v31, %v30
    %vm36 = vcmask 261120
    %v38 = vsel %vm36, %v23, 0
    %40 = vmatprep.subr.bf16.mxu0 0
    %41 = vmatpush1.bf16.msra.mxu0 %v32
    %42 = vmatprep.subr.bf16.mxu0 0
    %43 = vmatpush1.bf16.msra.mxu0 %v33
    %44 = vmatprep.subr.bf16.mxu0 0
    %45 = vmatpush1.bf16.msra.mxu0 0
    %46 = vmatprep.subr.bf16.mxu0 0
    %47 = vmatpush1.bf16.msra.mxu0 0
    %48 = vmatprep.subr.bf16.mxu0 0
    %49 = vmatpush1.bf16.msra.mxu0 0
    %50 = vmatprep.subr.bf16.mxu0 0
    %51 = vmatpush1.bf16.msra.mxu0 0
    %52 = vmatprep.subr.bf16.mxu0 0
    %53 = vmatpush1.bf16.msra.mxu0 0
    %54 = vmatprep.subr.bf16.mxu0 0
    %55 = vmatpush1.bf16.msra.mxu0 0
    %56 = vmatprep.subr.bf16.mxu0 0
    %57 = vmatpush1.bf16.msra.mxu0 0
    %58 = vmatprep.subr.bf16.mxu0 0
    %59 = vmatpush1.bf16.msra.mxu0 0
    %60 = vmatprep.subr.bf16.mxu0 0
    %61 = vmatpush1.bf16.msra.mxu0 0
    %62 = vmatprep.subr.bf16.mxu0 0
    %63 = vmatpush1.bf16.msra.mxu0 0
    %64 = vmatprep.subr.bf16.mxu0 0
    %65 = vmatpush1.bf16.msra.mxu0 0
    %66 = vmatprep.subr.bf16.mxu0 0
    %67 = vmatpush1.bf16.msra.mxu0 0
    %68 = vmatprep.subr.bf16.mxu0 0
    %69 = vmatpush1.bf16.msra.mxu0 0
    %70 = vmatprep.subr.bf16.mxu0 0
    %71 = vmatpush1.bf16.msra.mxu0 0
    %72 = vmatprep.mubr.bf16.mxu0 0
    %73 = vmatmul.mubr.bf16.gmra.mrb[0].mxu0 %v38
    %v74 = vpop.f32.mrb[0].mxu0
    %v75 = vadd.f32 0.0, %v74
    %v76 = vpop.f32.mrb[0].mxu0
    %v77 = vpop.f32.mrb[0].mxu0
    %v78 = vadd.f32 0.0, %v77
    %v79 = vpop.f32.mrb[0].mxu0
    %80 = vdwg.mxu0
    %v81 = vpack.c.bf16 %v75, %v75
    %v82 = vpack.c.bf16 %v78, %v78
    %84 = vrot.lane.b32.xlu0 %v81, 112
    %v85 = vpop.permute.xlu0 %84
    %vm86 = vcmask 130048
    %v88 = vsel %vm86, %v85, 0
    %v91 = vsel %vm86, %v81, 0
    %93 = vmatprep.subr.bf16.mxu0 0
    %94 = vmatpush1.bf16.xpose.msra.mxu0 %v91
    %95 = vmatprep.subr.bf16.mxu0 0
    %96 = vmatpush1.bf16.xpose.msra.mxu0 0
    %97 = vmatprep.subr.bf16.mxu0 0
    %98 = vmatpush1.bf16.xpose.msra.mxu0 0
    %99 = vmatprep.subr.bf16.mxu0 0
    %100 = vmatpush1.bf16.xpose.msra.mxu0 0
    %101 = vmatprep.subr.bf16.mxu0 0
    %102 = vmatpush1.bf16.xpose.msra.mxu0 0
    %103 = vmatprep.subr.bf16.mxu0 0
    %104 = vmatpush1.bf16.xpose.msra.mxu0 0
    %105 = vmatprep.subr.bf16.mxu0 0
    %106 = vmatpush1.bf16.xpose.msra.mxu0 0
    %107 = vmatprep.subr.bf16.mxu0 0
    %108 = vmatpush1.bf16.xpose.msra.mxu0 0
    %109 = vmatprep.subr.bf16.mxu0 0
    %110 = vmatpush1.bf16.xpose.msra.mxu0 0
    %111 = vmatprep.subr.bf16.mxu0 0
    %112 = vmatpush1.bf16.xpose.msra.mxu0 0
    %113 = vmatprep.subr.bf16.mxu0 0
    %114 = vmatpush1.bf16.xpose.msra.mxu0 0
    %115 = vmatprep.subr.bf16.mxu0 0
    %116 = vmatpush1.bf16.xpose.msra.mxu0 0
    %117 = vmatprep.subr.bf16.mxu0 0
    %118 = vmatpush1.bf16.xpose.msra.mxu0 0
    %119 = vmatprep.subr.bf16.mxu0 0
    %120 = vmatpush1.bf16.xpose.msra.mxu0 0
    %121 = vmatprep.subr.bf16.mxu0 0
    %122 = vmatpush1.bf16.xpose.msra.mxu0 0
    %123 = vmatprep.subr.bf16.mxu0 0
    %124 = vmatpush1.bf16.xpose.msra.mxu0 0
    %125 = vmatprep.mubr.bf16.mxu0 0
    %126 = vmatmul.mubr.bf16.gmra.mrb[0].mxu0 %v88
    %v127 = vpop.f32.mrb[0].mxu0
    %v128 = vadd.f32 0.0, %v127
    %v129 = vpop.f32.mrb[0].mxu0
    %v130 = vpop.f32.mrb[0].mxu0
    %v131 = vpop.f32.mrb[0].mxu0
    %132 = vdwg.mxu0
    %134 = vrot.lane.b32.xlu0 %v82, 112
    %v135 = vpop.permute.xlu0 %134
    %v137 = vsel %vm86, %v135, 0
    %v140 = vsel %vm86, %v82, 0
    %142 = vmatprep.subr.bf16.mxu0 0
    %143 = vmatpush1.bf16.xpose.msra.mxu0 %v140
    %144 = vmatprep.subr.bf16.mxu0 0
    %145 = vmatpush1.bf16.xpose.msra.mxu0 0
    %146 = vmatprep.subr.bf16.mxu0 0
    %147 = vmatpush1.bf16.xpose.msra.mxu0 0
    %148 = vmatprep.subr.bf16.mxu0 0
    %149 = vmatpush1.bf16.xpose.msra.mxu0 0
    %150 = vmatprep.subr.bf16.mxu0 0
    %151 = vmatpush1.bf16.xpose.msra.mxu0 0
    %152 = vmatprep.subr.bf16.mxu0 0
    %153 = vmatpush1.bf16.xpose.msra.mxu0 0
    %154 = vmatprep.subr.bf16.mxu0 0
    %155 = vmatpush1.bf16.xpose.msra.mxu0 0
    %156 = vmatprep.subr.bf16.mxu0 0
    %157 = vmatpush1.bf16.xpose.msra.mxu0 0
    %158 = vmatprep.subr.bf16.mxu0 0
    %159 = vmatpush1.bf16.xpose.msra.mxu0 0
    %160 = vmatprep.subr.bf16.mxu0 0
    %161 = vmatpush1.bf16.xpose.msra.mxu0 0
    %162 = vmatprep.subr.bf16.mxu0 0
    %163 = vmatpush1.bf16.xpose.msra.mxu0 0
    %164 = vmatprep.subr.bf16.mxu0 0
    %165 = vmatpush1.bf16.xpose.msra.mxu0 0
    %166 = vmatprep.subr.bf16.mxu0 0
    %167 = vmatpush1.bf16.xpose.msra.mxu0 0
    %168 = vmatprep.subr.bf16.mxu0 0
    %169 = vmatpush1.bf16.xpose.msra.mxu0 0
    %170 = vmatprep.subr.bf16.mxu0 0
    %171 = vmatpush1.bf16.xpose.msra.mxu0 0
    %172 = vmatprep.subr.bf16.mxu0 0
    %173 = vmatpush1.bf16.xpose.msra.mxu0 0
    %174 = vmatprep.mubr.bf16.mxu0 0
    %175 = vmatmul.mubr.bf16.gmra.mrb[0].mxu0 %v137
    %v176 = vpop.f32.mrb[0].mxu0
    %v177 = vadd.f32 0.0, %v176
    %v178 = vpop.f32.mrb[0].mxu0
    %v179 = vpop.f32.mrb[0].mxu0
    %v180 = vpop.f32.mrb[0].mxu0
    %181 = vdwg.mxu0
    %v182 = vlaneseq
    %v183 = vshrl.u32 %v182, 7
    %v184 = vlaneseq
    %v185 = vand.u32 %v184, 127
    %vm186 = vcmp.le.s32.totalorder %v185, %v183
    %v187 = vsel %vm186, 1, 0
    %vm188 = vcmp.eq.s32.totalorder %v187, 1
    %v189 = vsel %vm188, %v128, -1e+30
    %v190 = vsel %vm188, %v177, -1e+30
    %vm191 = vcmask 64512
    %v192 = vsel %vm191, %v189, -inf
    %193 = vmax.xlane.f32.xlu0 %v192
    %v194 = vpop.xlane.xlu0 %193
    %v195 = vsel %vm191, %v190, -inf
    %196 = vmax.xlane.f32.xlu0 %v195
    %v197 = vpop.xlane.xlu0 %196
    %v198 = vsub.f32 %v189, %v194
    %v199 = vsub.f32 %v190, %v197
    %v200 = vmul.f32 %v198, 1.442695
    %v201 = vpow.pop %v200
    %v202 = vmul.f32 %v199, 1.442695
    %v203 = vpow.pop %v202
    %v204 = vsel %vm191, %v201, 0.0
    %205 = vadd.xlane.f32.xlu0 %v204
    %v206 = vpop.xlane.xlu0 %205
    %v207 = vsel %vm191, %v203, 0.0
    %208 = vadd.xlane.f32.xlu0 %v207
    %v209 = vpop.xlane.xlu0 %208
    %v210 = vrcp.pop %v206
    %v211 = vrcp.pop %v209
    %v212 = vmul.f32 %v201, %v210
    %v213 = vmul.f32 %v203, %v211
    %v214 = vpack.c.bf16 %v212, %v212
    %v215 = vpack.c.bf16 %v213, %v213
    %216 = vrot.lane.b32.xlu0 %v81, 96
    %v217 = vpop.permute.xlu0 %216
    %v219 = vsel %vm191, %v214, 0
    %vm221 = vcmask 1043456
    %v223 = vsel %vm221, %v217, 0
    %225 = vmatprep.subr.bf16.mxu0 0
    %226 = vmatpush1.bf16.msra.mxu0 %v223
    %227 = vmatprep.subr.bf16.mxu0 0
    %228 = vmatpush1.bf16.msra.mxu0 0
    %229 = vmatprep.subr.bf16.mxu0 0
    %230 = vmatpush1.bf16.msra.mxu0 0
    %231 = vmatprep.subr.bf16.mxu0 0
    %232 = vmatpush1.bf16.msra.mxu0 0
    %233 = vmatprep.subr.bf16.mxu0 0
    %234 = vmatpush1.bf16.msra.mxu0 0
    %235 = vmatprep.subr.bf16.mxu0 0
    %236 = vmatpush1.bf16.msra.mxu0 0
    %237 = vmatprep.subr.bf16.mxu0 0
    %238 = vmatpush1.bf16.msra.mxu0 0
    %239 = vmatprep.subr.bf16.mxu0 0
    %240 = vmatpush1.bf16.msra.mxu0 0
    %241 = vmatprep.subr.bf16.mxu0 0
    %242 = vmatpush1.bf16.msra.mxu0 0
    %243 = vmatprep.subr.bf16.mxu0 0
    %244 = vmatpush1.bf16.msra.mxu0 0
    %245 = vmatprep.subr.bf16.mxu0 0
    %246 = vmatpush1.bf16.msra.mxu0 0
    %247 = vmatprep.subr.bf16.mxu0 0
    %248 = vmatpush1.bf16.msra.mxu0 0
    %249 = vmatprep.subr.bf16.mxu0 0
    %250 = vmatpush1.bf16.msra.mxu0 0
    %251 = vmatprep.subr.bf16.mxu0 0
    %252 = vmatpush1.bf16.msra.mxu0 0
    %253 = vmatprep.subr.bf16.mxu0 0
    %254 = vmatpush1.bf16.msra.mxu0 0
    %255 = vmatprep.subr.bf16.mxu0 0
    %256 = vmatpush1.bf16.msra.mxu0 0
    %257 = vmatprep.mubr.bf16.mxu0 0
    %258 = vmatmul.mubr.bf16.gmra.mrb[0].mxu0 %v219
    %v259 = vpop.f32.mrb[0].mxu0
    %v260 = vadd.f32 0.0, %v259
    %v261 = vpop.f32.mrb[0].mxu0
    %v262 = vpop.f32.mrb[0].mxu0
    %v263 = vpop.f32.mrb[0].mxu0
    %264 = vdwg.mxu0
    %265 = vrot.lane.b32.xlu0 %v82, 96
    %v266 = vpop.permute.xlu0 %265
    %v268 = vsel %vm191, %v215, 0
    %v271 = vsel %vm221, %v266, 0
    %273 = vmatprep.subr.bf16.mxu0 0
    %274 = vmatpush1.bf16.msra.mxu0 %v271
    %275 = vmatprep.subr.bf16.mxu0 0
    %276 = vmatpush1.bf16.msra.mxu0 0
    %277 = vmatprep.subr.bf16.mxu0 0
    %278 = vmatpush1.bf16.msra.mxu0 0
    %279 = vmatprep.subr.bf16.mxu0 0
    %280 = vmatpush1.bf16.msra.mxu0 0
    %281 = vmatprep.subr.bf16.mxu0 0
    %282 = vmatpush1.bf16.msra.mxu0 0
    %283 = vmatprep.subr.bf16.mxu0 0
    %284 = vmatpush1.bf16.msra.mxu0 0
    %285 = vmatprep.subr.bf16.mxu0 0
    %286 = vmatpush1.bf16.msra.mxu0 0
    %287 = vmatprep.subr.bf16.mxu0 0
    %288 = vmatpush1.bf16.msra.mxu0 0
    %289 = vmatprep.subr.bf16.mxu0 0
    %290 = vmatpush1.bf16.msra.mxu0 0
    %291 = vmatprep.subr.bf16.mxu0 0
    %292 = vmatpush1.bf16.msra.mxu0 0
    %293 = vmatprep.subr.bf16.mxu0 0
    %294 = vmatpush1.bf16.msra.mxu0 0
    %295 = vmatprep.subr.bf16.mxu0 0
    %296 = vmatpush1.bf16.msra.mxu0 0
    %297 = vmatprep.subr.bf16.mxu0 0
    %298 = vmatpush1.bf16.msra.mxu0 0
    %299 = vmatprep.subr.bf16.mxu0 0
    %300 = vmatpush1.bf16.msra.mxu0 0
    %301 = vmatprep.subr.bf16.mxu0 0
    %302 = vmatpush1.bf16.msra.mxu0 0
    %303 = vmatprep.subr.bf16.mxu0 0
    %304 = vmatpush1.bf16.msra.mxu0 0
    %305 = vmatprep.mubr.bf16.mxu0 0
    %306 = vmatmul.mubr.bf16.gmra.mrb[0].mxu0 %v268
    %v307 = vpop.f32.mrb[0].mxu0
    %v308 = vadd.f32 0.0, %v307
    %v309 = vpop.f32.mrb[0].mxu0
    %v310 = vpop.f32.mrb[0].mxu0
    %v311 = vpop.f32.mrb[0].mxu0
    %312 = vdwg.mxu0
    %313 = vst.msk [vmem:[#allocation2] sm:$0xff] %vm86, %v260
    %314 = vst.msk [vmem:[#allocation2 + $0x8] sm:$0xff] %vm86, %v308
    // Predicated region
    $region10: #{head_forward.1} parent=1 // pred_check
      _
    $region11: #{head_forward.1} parent=1 // pred_check_branch
      %316 = sbr.rel (0) target = $region13
    $region12: #{head_forward.1} parent=1 // pred_region
      %s318 = ssub.s32 256, 256
      %319 = vsyncadd [#allocation3], %s318
      %s320 = sshll.u32 [#allocation2], 4
      %s321 = int_to_ptr.vmem [resolvable:$true] %s320
      %326 = dma.vmem_to_hbm [thread:$0]  %s321, 256, %s2, [#allocation3], 128, 128, 8
    $region13: #{head_forward.1} parent=1 // pred_fallthru
      _
    // Predicated region
    $region14: #{head_forward.1} parent=1 // pred_check
      _
    $region15: #{head_forward.1} parent=1 // pred_check_branch
      %328 = sbr.rel (0) target = $region17
    $region16: #{head_forward.1} parent=1 // pred_region
      %329 = dma.done [#allocation3], 256
    $region17: #{head_forward.1} parent=1 // pred_fallthru
      _
    %330 = vsyncpa [#allocation3], 1

</llo_original>
